<compile_context>
chip_gen: v5e
topology: v5e:2x2
jax: 0.10.0
libtpu: 0.0.40
codegen_flags: <defaults>
</compile_context>

<pallas_src>
import math
import functools

import jax
import jax.numpy as jnp
from jax import lax
from jax.experimental import pallas as pl
from jax.experimental.pallas import tpu as pltpu


# ---------------------------------------------------------------------------
# Kernel
# ---------------------------------------------------------------------------
def _attn_kernel(q_ref, k_ref, v_ref, o_ref, *, hb, ch, scale2, mxu_dtype,
                 defer_norm, approx_recip):
    # q_ref/o_ref: (1, hb*C, TQ) blocks; k_ref/v_ref: (1, hb*C, T) blocks.
    tq = q_ref.shape[-1]
    t = k_ref.shape[-1]

    # Fold the double scale into q only; multiply in f32 on the small q tile,
    # then cast once to the MXU operand dtype.
    q = (q_ref[0].astype(jnp.float32) * scale2).astype(mxu_dtype)
    q = jnp.swapaxes(q.reshape(hb, ch, tq), 1, 2)            # (hb, tq, C) small XLU transpose
    k = k_ref[0].astype(mxu_dtype).reshape(hb, ch, t)        # (hb, C, T)
    v = v_ref[0].astype(mxu_dtype).reshape(hb, ch, t)        # (hb, C, T)

    # scores[b, i, s] = sum_c q[b, i, c] * k[b, c, s]   (MXU, f32 accumulate)
    w = lax.dot_general(
        q, k,
        dimension_numbers=(((2,), (1,)), ((0,), (0,))),
        preferred_element_type=jnp.float32,
    )  # (hb, tq, T)

    # f32 softmax over the key axis (matches th.softmax(weight.float(), -1)).
    w = jnp.exp(w - jnp.max(w, axis=-1, keepdims=True))
    denom = jnp.sum(w, axis=-1, keepdims=True)               # (hb, tq, 1)

    if defer_norm:
        # Normalize after the second matmul: saves a full VPU pass + load/store
        # over the (tq, T) score tile; the post-matmul scale touches only
        # (C, tq) elements.
        p = w.astype(mxu_dtype)
    else:
        # Exact module order for the f32 path: softmax -> cast -> matmul.
        p = (w / denom).astype(mxu_dtype)

    # out[b, c, i] = sum_s v[b, c, s] * p[b, i, s]      (MXU, f32 accumulate)
    # v is the LHS so the output block is lane-dense in the query axis
    # (unmasked stores, no wrapper-side output transpose needed).
    a = lax.dot_general(
        v, p,
        dimension_numbers=(((2,), (2,)), ((0,), (0,))),
        preferred_element_type=jnp.float32,
    )  # (hb, C, tq)

    if defer_norm:
        inv = pl.reciprocal(denom, approx=approx_recip)      # (hb, tq, 1)
        a = a * inv.reshape(hb, 1, tq)                       # tiny relayout, broadcast over C

    o_ref[0] = a.reshape(hb * ch, tq).astype(o_ref.dtype)


# ---------------------------------------------------------------------------
# Tiling heuristics (VMEM / megacore aware)
# ---------------------------------------------------------------------------
def _vmem_budget():
    cap = 0
    try:
        cap = int(pltpu.get_tpu_info().vmem_capacity_bytes)
    except Exception:
        cap = 0
    if cap <= 0:
        cap = 64 * 1024 * 1024  # conservative default (v7x per-core VMEM)
    # Leave headroom for Mosaic-internal scratch.
    return max(32 * 1024 * 1024, min(int(cap * 0.75), 112 * 1024 * 1024))


def _vmem_bytes(hb, ch, tq, t, dsize):
    qo = 2 * (2 * hb * ch * tq * dsize)     # q + out blocks, double-buffered
    kv = 2 * (2 * hb * ch * t * dsize)      # k + v blocks, double-buffered
    work = 3 * hb * tq * t * 4              # f32 score temporaries (w / exp / p)
    return qo + kv + work


def _min_head_block(n_heads, ch, sub):
    """Smallest head batch whose channel width is sublane-tile aligned."""
    for hb in range(1, n_heads + 1):
        if n_heads % hb == 0 and (hb * ch) % sub == 0:
            return hb
    return None


def _pick_query_tile(length, hb, ch, dsize, budget):
    """Largest multiple-of-128 divisor of `length` that fits VMEM (else full)."""
    cands = [t for t in range(128, length + 1, 128) if length % t == 0]
    if not cands:
        # TODO(synk): for long sequences that are not a multiple of 128, add a
        # key-tiled online-softmax path instead of a single full-length block.
        return length
    cap = 512 if budget >= 80 * 1024 * 1024 else 256
    fitting = [t for t in cands
               if t <= cap and _vmem_bytes(hb, ch, t, length, dsize) <= budget]
    if fitting:
        return max(fitting)
    return min(cands)  # best effort


def _grow_head_block(hb0, bs, n_heads, ch, length, tq, sub, dsize, budget):
    """Batch more heads per step only while per-head work is tiny, VMEM fits,
    and at least 2 parallel grid steps remain (v7x megacore occupancy)."""
    hb = hb0
    for cand in range(hb0 + 1, n_heads + 1):
        if n_heads % cand or (cand * ch) % sub:
            continue
        if cand * ch * length > 128 * 128:
            continue
        if not ((bs * n_heads) // cand >= 2 or length // tq >= 2):
            continue
        if _vmem_bytes(cand, ch, tq, length, dsize) > budget:
            continue
        hb = cand
    return hb


# ---------------------------------------------------------------------------
# Wrapper
# ---------------------------------------------------------------------------
def qkv_attention(qkv, n_heads, *, use_bf16_matmul=False):
    """JAX/Pallas equivalent of QKVAttention.forward.

    :param qkv: [N, 3*H*C, T] array.
    :return: [N, H*C, T] array.
    """
    bs, width, length = qkv.shape
    assert width % (3 * n_heads) == 0
    ch = width // (3 * n_heads)
    dtype = qkv.dtype
    dsize = jnp.dtype(dtype).itemsize
    scale = 1.0 / math.sqrt(math.sqrt(ch))
    scale2 = scale * scale  # folded into q only

    sub = max(8, 32 // dsize)  # sublane tile: 8 (f32), 16 (bf16), 32 (int8/fp8)
    hb = _min_head_block(n_heads, ch, sub)
    if hb is None:
        # TODO(synk): pad the per-head channel axis to the sublane tile for
        # head dims that cannot be grouped into an aligned block.
        raise NotImplementedError(
            f"head dim {ch} with {n_heads} heads cannot form a sublane-aligned block")

    budget = _vmem_budget()
    tq = _pick_query_tile(length, hb, ch, dsize, budget)
    hb = _grow_head_block(hb, bs, n_heads, ch, length, tq, sub, dsize, budget)

    ghb = n_heads // hb          # head blocks per sample
    hcw = hb * ch                # channel width of one block
    grid = (bs, ghb, length // tq)

    mxu_dtype = jnp.bfloat16 if (use_bf16_matmul and dtype == jnp.float32) else dtype
    defer_norm = dtype != jnp.float32   # exact softmax order for the f32 path
    approx = dtype != jnp.float32

    # All three q/k/v views address the SAME [N, 3*H*C, T] buffer; the section
    # offsets live entirely in the index_maps (block units of hb*C channels).
    q_spec = pl.BlockSpec((1, hcw, tq), lambda n, g, t: (n, g, t))
    k_spec = pl.BlockSpec((1, hcw, length), lambda n, g, t: (n, ghb + g, 0))
    v_spec = pl.BlockSpec((1, hcw, length), lambda n, g, t: (n, 2 * ghb + g, 0))
    o_spec = pl.BlockSpec((1, hcw, tq), lambda n, g, t: (n, g, t))

    cost = pl.CostEstimate(
        flops=4 * bs * n_heads * length * length * ch,
        transcendentals=bs * n_heads * length * length,
        bytes_accessed=4 * bs * n_heads * ch * length * dsize,
    )

    out = pl.pallas_call(
        functools.partial(
            _attn_kernel, hb=hb, ch=ch, scale2=scale2, mxu_dtype=mxu_dtype,
            defer_norm=defer_norm, approx_recip=approx),
        out_shape=jax.ShapeDtypeStruct((bs, n_heads * ch, length), dtype),
        grid=grid,
        in_specs=[q_spec, k_spec, v_spec],
        out_specs=o_spec,
        compiler_params=pltpu.CompilerParams(
            # batch / head axes first so megacore splits on heads and each
            # TensorCore keeps its own K/V resident across the query tiles.
            dimension_semantics=("parallel", "parallel", "arbitrary"),
            vmem_limit_bytes=budget,
        ),
        cost_estimate=cost,
    )(qkv, qkv, qkv)

    return out  # already [N, H*C, T]


# ---------------------------------------------------------------------------
# Pure-jnp reference mirroring the PyTorch semantics (incl. dtype casts)
# ---------------------------------------------------------------------------
def _reference(qkv, n_heads):
    bs, width, length = qkv.shape
    ch = width // (3 * n_heads)
    q, k, v = jnp.split(qkv, 3, axis=1)
    scale = 1.0 / math.sqrt(math.sqrt(ch))
    qh = (q * scale).reshape(bs * n_heads, ch, length)
    kh = (k * scale).reshape(bs * n_heads, ch, length)
    vh = v.reshape(bs * n_heads, ch, length)
    w = jnp.einsum('bct,bcs->bts', qh, kh, preferred_element_type=jnp.float32)
    w = jax.nn.softmax(w, axis=-1).astype(qkv.dtype)
    a = jnp.einsum('bts,bcs->bct', w, vh, preferred_element_type=jnp.float32)
    return a.reshape(bs, -1, length).astype(qkv.dtype)


if __name__ == "__main__":
    key = jax.random.PRNGKey(0)
    k1, k2, k3 = jax.random.split(key, 3)

    # --- Test 1: small module-like shapes (N=2, H=2, C=8, T=16), f32 -------
    n_heads, bs, ch, length = 2, 2, 8, 16
    qkv = jax.random.normal(k1, (bs, 3 * n_heads * ch, length), dtype=jnp.float32)
    out = jax.block_until_ready(qkv_attention(qkv, n_heads))
    ref = _reference(qkv, n_heads)
    assert out.shape == (bs, n_heads * ch, length)
    assert jnp.allclose(out, ref, atol=1e-4, rtol=1e-4), "f32 small-shape mismatch"

    # --- Test 2: exercises query tiling (T=512 -> tq multiple of 128), f32 -
    n_heads2, bs2, ch2, length2 = 2, 1, 16, 512
    qkv2 = jax.random.normal(
        k2, (bs2, 3 * n_heads2 * ch2, length2), dtype=jnp.float32)
    out2 = jax.block_until_ready(qkv_attention(qkv2, n_heads2))
    ref2 = _reference(qkv2, n_heads2)
    assert jnp.allclose(out2, ref2, atol=1e-4, rtol=1e-4), "tiled f32 mismatch"

    # --- Test 3: bf16 path (deferred normalization + approx reciprocal) ----
    n_heads3, bs3, ch3, length3 = 2, 2, 16, 256
    qkv3 = jax.random.normal(
        k3, (bs3, 3 * n_heads3 * ch3, length3), dtype=jnp.float32
    ).astype(jnp.bfloat16)
    out3 = jax.block_until_ready(qkv_attention(qkv3, n_heads3))
    ref3 = _reference(qkv3, n_heads3).astype(jnp.float32)
    err = jnp.max(jnp.abs(out3.astype(jnp.float32) - ref3))
    assert err < 0.1, f"bf16 mismatch, max abs err {err}"

    print("KERNEL_OK")
</pallas_src>

<mosaic_0001>
module attributes {stable_mosaic.version = 11 : i64} {
  func.func @_attn_kernel(%arg0: i32, %arg1: i32, %arg2: i32, %arg3: memref<1x16x16xf32, #tpu.memory_space<vmem>>, %arg4: memref<1x16x16xf32, #tpu.memory_space<vmem>>, %arg5: memref<1x16x16xf32, #tpu.memory_space<vmem>>, %arg6: memref<1x16x16xf32, #tpu.memory_space<vmem>>) attributes {dimension_semantics = [#tpu.dimension_semantics<parallel>, #tpu.dimension_semantics<parallel>, #tpu.dimension_semantics<arbitrary>], iteration_bounds = array<i64: 2, 1, 1>, scalar_prefetch = 0 : i64, scratch_operands = 0 : i64, tpu.core_type = #tpu.core_type<tc>, window_params = [{transform_indices = @transform_0, window_bounds = array<i64: 1, 16, 16>}, {transform_indices = @transform_1, window_bounds = array<i64: 1, 16, 16>}, {transform_indices = @transform_2, window_bounds = array<i64: 1, 16, 16>}, {transform_indices = @transform_3, window_bounds = array<i64: 1, 16, 16>}]} {
    %c0 = arith.constant 0 : index
    %c0_0 = arith.constant 0 : index
    %c0_1 = arith.constant 0 : index
    %0 = vector.load %arg3[%c0, %c0_0, %c0_1] : memref<1x16x16xf32, #tpu.memory_space<vmem>>, vector<1x16x16xf32>
    %1 = vector.shape_cast %0 : vector<1x16x16xf32> to vector<16x16xf32>
    %cst = arith.constant 0.353553385 : f32
    %2 = vector.broadcast %cst : f32 to vector<16x16xf32>
    %3 = arith.mulf %1, %2 : vector<16x16xf32>
    %4 = vector.shape_cast %3 : vector<16x16xf32> to vector<2x8x16xf32>
    %5 = tpu.transpose %4, [0, 2, 1] : vector<2x8x16xf32> -> vector<2x16x8xf32>
    %c0_2 = arith.constant 0 : index
    %c0_3 = arith.constant 0 : index
    %c0_4 = arith.constant 0 : index
    %6 = vector.load %arg4[%c0_2, %c0_3, %c0_4] : memref<1x16x16xf32, #tpu.memory_space<vmem>>, vector<1x16x16xf32>
    %7 = vector.shape_cast %6 : vector<1x16x16xf32> to vector<16x16xf32>
    %8 = vector.shape_cast %7 : vector<16x16xf32> to vector<2x8x16xf32>
    %c0_5 = arith.constant 0 : index
    %c0_6 = arith.constant 0 : index
    %c0_7 = arith.constant 0 : index
    %9 = vector.load %arg5[%c0_5, %c0_6, %c0_7] : memref<1x16x16xf32, #tpu.memory_space<vmem>>, vector<1x16x16xf32>
    %10 = vector.shape_cast %9 : vector<1x16x16xf32> to vector<16x16xf32>
    %11 = vector.shape_cast %10 : vector<16x16xf32> to vector<2x8x16xf32>
    %cst_8 = arith.constant dense<0.000000e+00> : vector<2x16x16xf32>
    %12 = tpu.matmul %5, %8, %cst_8 {dimension_numbers = #tpu.dot_dimension_numbers<[2], [1], [1], [2], [0, 0, 0, 1, 1, 2], [0], [0]>} : vector<2x16x8xf32>, vector<2x8x16xf32>, vector<2x16x16xf32> -> vector<2x16x16xf32>
    %cst_9 = arith.constant dense<0xFF800000> : vector<2x16xf32>
    %13 = vector.multi_reduction <maximumf>, %12, %cst_9 [2] : vector<2x16x16xf32> to vector<2x16xf32>
    %14 = vector.shape_cast %13 : vector<2x16xf32> to vector<2x16x1xf32>
    %15 = vector.broadcast %14 : vector<2x16x1xf32> to vector<2x16x16xf32>
    %16 = arith.subf %12, %15 : vector<2x16x16xf32>
    %17 = math.exp %16 : vector<2x16x16xf32>
    %cst_10 = arith.constant dense<0.000000e+00> : vector<2x16xf32>
    %18 = vector.multi_reduction <add>, %17, %cst_10 [2] : vector<2x16x16xf32> to vector<2x16xf32>
    %19 = vector.shape_cast %18 : vector<2x16xf32> to vector<2x16x1xf32>
    %20 = vector.broadcast %19 : vector<2x16x1xf32> to vector<2x16x16xf32>
    %21 = arith.divf %17, %20 : vector<2x16x16xf32>
    %cst_11 = arith.constant dense<0.000000e+00> : vector<2x8x16xf32>
    %22 = tpu.matmul %11, %21, %cst_11 {dimension_numbers = #tpu.dot_dimension_numbers<[2], [2], [1], [1], [0, 0, 0, 1, 1, 1], [0], [0]>} : vector<2x8x16xf32>, vector<2x16x16xf32>, vector<2x8x16xf32> -> vector<2x8x16xf32>
    %23 = vector.shape_cast %22 : vector<2x8x16xf32> to vector<16x16xf32>
    %c0_12 = arith.constant 0 : index
    %c0_13 = arith.constant 0 : index
    %c0_14 = arith.constant 0 : index
    %24 = vector.load %arg6[%c0_12, %c0_13, %c0_14] : memref<1x16x16xf32, #tpu.memory_space<vmem>>, vector<1x16x16xf32>
    %25 = vector.shape_cast %24 : vector<1x16x16xf32> to vector<16x16xf32>
    %26 = vector.shape_cast %23 : vector<16x16xf32> to vector<1x16x16xf32>
    tpu.vector_store %arg6[%c0_12, %c0_13, %c0_14], %26 {strides = array<i32>} : memref<1x16x16xf32, #tpu.memory_space<vmem>>, vector<1x16x16xf32>,
    return
  }
  func.func @transform_0(%arg0: i32, %arg1: i32, %arg2: i32) -> (i32, i32, i32) {
    %c0_i32 = arith.constant 0 : i32
    return %arg0, %arg1, %arg2 : i32, i32, i32
  }
  func.func @transform_1(%arg0: i32, %arg1: i32, %arg2: i32) -> (i32, i32, i32) {
    %c1_i32 = arith.constant 1 : i32
    %0 = arith.addi %c1_i32, %arg1 : i32
    %c0_i32 = arith.constant 0 : i32
    %c0_i32_0 = arith.constant 0 : i32
    return %arg0, %0, %c0_i32 : i32, i32, i32
  }
  func.func @transform_2(%arg0: i32, %arg1: i32, %arg2: i32) -> (i32, i32, i32) {
    %c2_i32 = arith.constant 2 : i32
    %0 = arith.addi %c2_i32, %arg1 : i32
    %c0_i32 = arith.constant 0 : i32
    %c0_i32_0 = arith.constant 0 : i32
    return %arg0, %0, %c0_i32 : i32, i32, i32
  }
  func.func @transform_3(%arg0: i32, %arg1: i32, %arg2: i32) -> (i32, i32, i32) {
    %c0_i32 = arith.constant 0 : i32
    return %arg0, %arg1, %arg2 : i32, i32, i32
  }
}

</mosaic_0001>

<llo_original>
// kernel: tpu_custom_call.1
$region0: #{tpu_custom_call.1}
  #allocation0 [shape = 'u32[]', space=smem, size = 0x4, offset = 0x4, fixed_abs, tag = 'smem constant byte address 0x4 - core index']
  #allocation1 [shape = 'u32[72,128]{1,0:T(1,128)}', space=vmem, size = 0x9000, scoped, tag = 'internal scratch']
  %s0 = inlined_call_operand.vmem [shape: f32[2,48,16], index: 0, kind: input, shape index: {}]
  %s1 = inlined_call_operand.vmem [shape: f32[2,48,16], index: 1, kind: input, shape index: {}]
  %s2 = inlined_call_operand.vmem [shape: f32[2,48,16], index: 2, kind: input, shape index: {}]
  %s3 = inlined_call_operand.hbm [shape: f32[2,16,16], index: 3, kind: output, shape index: {}]
  %s4 = sld [smem:[#allocation0]]
  $region45: #{tpu_custom_call.1} parent=0
    _
  %s6 = ssub.s32 1, %s4
  %s7 = scalar_select 0, %s6, %s4
  $region1: #{tpu_custom_call.1} parent=0
    #allocation2 [shape = 'u8[16384]{0}', space=vmem, size = 0x4000, scoped, tag = 'output window, operand 0']
    #allocation3 [shape = 's32[2]{0}', space=sflag, size = 0x8, scoped, tag = 'scoped memory for tpu_custom_call.1']
    %8 = vsyncpa [#allocation3], 0
    %s9 = scalar_lea.sflag [#allocation3], 1
    %10 = vsyncpa %s9, 0
    loop: start=0, step=1, limit=4
    $region2: #{tpu_custom_call.1} parent=1 // loop_pre_header
      _
    $region3: #{tpu_custom_call.1} parent=1 // loop_header
      %s12 = sphi 0, %s16
      %p13 = scmp.ge.s32.totalorder %s12, 4
      %s19 = sphi 0, %s38
      %s20 = sphi 0, %s34
      %s21 = sphi 0, %s30
      %s22 = sphi 0, %s19
      %s23 = sphi 0, %s20
      %s24 = sphi 0, %s21
      %s25 = sphi 0, %s22
      %s26 = sphi 0, %s23
      %s27 = sphi 0, %s24
      %s45 = sphi 0, %s47
      %s48 = sphi 0, %s45
      %s49 = sphi 0, %s48
      %s65 = sphi 0, %s49
      %s75 = sphi 0, %s77
      %s78 = sphi 0, %s75
      %s79 = sphi 0, %s78
      %s95 = sphi 0, %s79
      %s105 = sphi 0, %s107
      %s108 = sphi 0, %s105
      %s109 = sphi 0, %s108
      %s125 = sphi 0, %s109
      %s135 = sphi 0, %s137
      %s138 = sphi 0, %s135
      %s139 = sphi 0, %s138
      %s155 = sphi 0, %s139
    $region4: #{tpu_custom_call.1} parent=1 // loop_header_branch
      %15 = sbr.rel (%p13) target = $region8
    $region5: #{tpu_custom_call.1} parent=1 // loop_body
      %s17 = ssub.s32 %s12, 1
      %s18 = ssub.s32 %s12, 2
      %s28 = sadd.s32 1, %s21
      %p29 = scmp.ge.s32.totalorder %s28, 1
      %s30 = scalar_select %p29, 0, %s28
      %s31 = sadd.s32 1, %s20
      %s32 = scalar_select %p29, %s31, %s20
      %p33 = scmp.ge.s32.totalorder %s32, 1
      %s34 = scalar_select %p33, 0, %s32
      %s35 = sadd.s32 1, %s19
      %s36 = scalar_select %p33, %s35, %s19
      %p37 = scmp.ge.s32.totalorder %s36, 2
      %s38 = scalar_select %p37, 0, %s36
      %s39 = ssub.s32 %s19, %s38
      %s40 = ssub.s32 %s20, %s34
      %s41 = sor.u32 %s39, %s40
      %s42 = ssub.s32 %s21, %s30
      %s43 = sor.u32 %s41, %s42
      %p44 = scmp.eq.s32.totalorder %s43, 0
      %s46 = sadd.s32 %s45, 1
      %s47 = scalar_select %p44, %s45, %s46
      %p50 = pneg %p44
      %p51 = scmp.eq.s32.totalorder %s12, 1
      %p52 = por %p50, %p51
      %p53 = scmp.ne.s32.totalorder %s45, %s48
      %p54 = scmp.eq.s32.totalorder %s12, 0
      %p55 = por %p53, %p54
      %p56 = scmp.ne.s32.totalorder %s45, %s48
      %p57 = scmp.eq.s32.totalorder %s17, 1
      %p58 = por %p56, %p57
      %p59 = scmp.ne.s32.totalorder %s48, %s49
      %p60 = scmp.eq.s32.totalorder %s17, 0
      %p61 = por %p59, %p60
      %p62 = scmp.ne.s32.totalorder %s48, %s49
      %p63 = scmp.eq.s32.totalorder %s18, 1
      %p64 = por %p62, %p63
      %p66 = scmp.ne.s32.totalorder %s49, %s65
      %p67 = scmp.eq.s32.totalorder %s18, 0
      %p68 = por %p66, %p67
      %s69 = sadd.s32 %s20, 1
      %s70 = sadd.s32 %s34, 1
      %s71 = ssub.s32 %s19, %s38
      %s72 = ssub.s32 %s69, %s70
      %s73 = sor.u32 %s71, %s72
      %p74 = scmp.eq.s32.totalorder %s73, 0
      %s76 = sadd.s32 %s75, 1
      %s77 = scalar_select %p74, %s75, %s76
      %p80 = pneg %p74
      %p81 = scmp.eq.s32.totalorder %s12, 1
      %p82 = por %p80, %p81
      %p83 = scmp.ne.s32.totalorder %s75, %s78
      %p84 = scmp.eq.s32.totalorder %s12, 0
      %p85 = por %p83, %p84
      %p86 = scmp.ne.s32.totalorder %s75, %s78
      %p87 = scmp.eq.s32.totalorder %s17, 1
      %p88 = por %p86, %p87
      %p89 = scmp.ne.s32.totalorder %s78, %s79
      %p90 = scmp.eq.s32.totalorder %s17, 0
      %p91 = por %p89, %p90
      %p92 = scmp.ne.s32.totalorder %s78, %s79
      %p93 = scmp.eq.s32.totalorder %s18, 1
      %p94 = por %p92, %p93
      %p96 = scmp.ne.s32.totalorder %s79, %s95
      %p97 = scmp.eq.s32.totalorder %s18, 0
      %p98 = por %p96, %p97
      %s99 = sadd.s32 %s20, 2
      %s100 = sadd.s32 %s34, 2
      %s101 = ssub.s32 %s19, %s38
      %s102 = ssub.s32 %s99, %s100
      %s103 = sor.u32 %s101, %s102
      %p104 = scmp.eq.s32.totalorder %s103, 0
      %s106 = sadd.s32 %s105, 1
      %s107 = scalar_select %p104, %s105, %s106
      %p110 = pneg %p104
      %p111 = scmp.eq.s32.totalorder %s12, 1
      %p112 = por %p110, %p111
      %p113 = scmp.ne.s32.totalorder %s105, %s108
      %p114 = scmp.eq.s32.totalorder %s12, 0
      %p115 = por %p113, %p114
      %p116 = scmp.ne.s32.totalorder %s105, %s108
      %p117 = scmp.eq.s32.totalorder %s17, 1
      %p118 = por %p116, %p117
      %p119 = scmp.ne.s32.totalorder %s108, %s109
      %p120 = scmp.eq.s32.totalorder %s17, 0
      %p121 = por %p119, %p120
      %p122 = scmp.ne.s32.totalorder %s108, %s109
      %p123 = scmp.eq.s32.totalorder %s18, 1
      %p124 = por %p122, %p123
      %p126 = scmp.ne.s32.totalorder %s109, %s125
      %p127 = scmp.eq.s32.totalorder %s18, 0
      %p128 = por %p126, %p127
      %s129 = ssub.s32 %s19, %s38
      %s130 = ssub.s32 %s20, %s34
      %s131 = sor.u32 %s129, %s130
      %s132 = ssub.s32 %s21, %s30
      %s133 = sor.u32 %s131, %s132
      %p134 = scmp.eq.s32.totalorder %s133, 0
      %s136 = sadd.s32 %s135, 1
      %s137 = scalar_select %p134, %s135, %s136
      %p140 = pneg %p134
      %p141 = scmp.eq.s32.totalorder %s12, 1
      %p142 = por %p140, %p141
      %p143 = scmp.ne.s32.totalorder %s135, %s138
      %p144 = scmp.eq.s32.totalorder %s12, 0
      %p145 = por %p143, %p144
      %p146 = scmp.ne.s32.totalorder %s135, %s138
      %p147 = scmp.eq.s32.totalorder %s17, 1
      %p148 = por %p146, %p147
      %p149 = scmp.ne.s32.totalorder %s138, %s139
      %p150 = scmp.eq.s32.totalorder %s17, 0
      %p151 = por %p149, %p150
      %p152 = scmp.ne.s32.totalorder %s138, %s139
      %p153 = scmp.eq.s32.totalorder %s18, 1
      %p154 = por %p152, %p153
      %p156 = scmp.ne.s32.totalorder %s139, %s155
      %p157 = scmp.eq.s32.totalorder %s18, 0
      %p158 = por %p156, %p157
      %p159 = scmp.le.s32.totalorder 1, %s12
      %p160 = scmp.lt.s32.totalorder %s12, 3
      %p161 = pnand %p159, %p160
      %p162 = pneg %p161
      // Predicated region
      $region9: #{tpu_custom_call.1} parent=5 // pred_check
        _
      $region10: #{tpu_custom_call.1} parent=5 // pred_check_branch
        %164 = sbr.rel (%p161) target = $region12
      $region11: #{tpu_custom_call.1} parent=5 // pred_region
        %s165 = ssub.s32 %s12, 1
      $region12: #{tpu_custom_call.1} parent=5 // pred_fallthru
        _
      %p166 = scmp.lt.s32.totalorder %s12, 2
      // Predicated region
      $region13: #{tpu_custom_call.1} parent=5 // pred_check
        %p167 = pneg %p166
      $region14: #{tpu_custom_call.1} parent=5 // pred_check_branch
        %169 = sbr.rel (%p167) target = $region16
      $region15: #{tpu_custom_call.1} parent=5 // pred_region
        // Predicated region
        $region17: #{tpu_custom_call.1} parent=15 // pred_check
          %p170 = pneg %p55
        $region18: #{tpu_custom_call.1} parent=15 // pred_check_branch
          %172 = sbr.rel (%p170) target = $region20
        $region19: #{tpu_custom_call.1} parent=15 // pred_region
          %s173 = smul.u32 2, %s20
          %p174 = scmp.lt.s32.totalorder %s19, 1
          %s175 = scalar_select %p174, %s19, 1
          %p176 = scmp.lt.s32.totalorder %s173, 5
          %s177 = scalar_select %p176, %s173, 5
          %p178 = scmp.lt.s32.totalorder %s21, 0
          %s179 = scalar_select %p178, %s21, 0
          %s180 = sadd.s32 %s179, %s177
          %s181 = smul.addr %s175, 6
          %s182 = sadd.s32 %s180, %s181
          %s183 = smul.addr %s182, 8
          %s184 = scalar_lea.vmem %s0, %s183
          %s185 = smul.u32 2, %s20
        $region20: #{tpu_custom_call.1} parent=15 // pred_fallthru
          _
        // Predicated region
        $region21: #{tpu_custom_call.1} parent=15 // pred_check
          %p186 = pneg %p85
        $region22: #{tpu_custom_call.1} parent=15 // pred_check_branch
          %188 = sbr.rel (%p186) target = $region24
        $region23: #{tpu_custom_call.1} parent=15 // pred_region
          %s189 = sadd.s32 %s20, 1
          %s190 = smul.u32 2, %s189
          %p191 = scmp.lt.s32.totalorder %s19, 1
          %s192 = scalar_select %p191, %s19, 1
          %p193 = scmp.lt.s32.totalorder %s190, 5
          %s194 = scalar_select %p193, %s190, 5
          %s195 = smul.addr %s192, 6
          %s196 = sadd.s32 %s194, %s195
          %s197 = smul.addr %s196, 8
          %s198 = scalar_lea.vmem %s1, %s197
          %s199 = sadd.s32 %s20, 1
          %s200 = smul.u32 2, %s199
        $region24: #{tpu_custom_call.1} parent=15 // pred_fallthru
          _
        // Predicated region
        $region25: #{tpu_custom_call.1} parent=15 // pred_check
          %p201 = pneg %p115
        $region26: #{tpu_custom_call.1} parent=15 // pred_check_branch
          %203 = sbr.rel (%p201) target = $region28
        $region27: #{tpu_custom_call.1} parent=15 // pred_region
          %s204 = sadd.s32 %s20, 2
          %s205 = smul.u32 2, %s204
          %p206 = scmp.lt.s32.totalorder %s19, 1
          %s207 = scalar_select %p206, %s19, 1
          %p208 = scmp.lt.s32.totalorder %s205, 5
          %s209 = scalar_select %p208, %s205, 5
          %s210 = smul.addr %s207, 6
          %s211 = sadd.s32 %s209, %s210
          %s212 = smul.addr %s211, 8
          %s213 = scalar_lea.vmem %s2, %s212
          %s214 = sadd.s32 %s20, 2
          %s215 = smul.u32 2, %s214
        $region28: #{tpu_custom_call.1} parent=15 // pred_fallthru
          _
      $region16: #{tpu_custom_call.1} parent=5 // pred_fallthru
        _
      %p216 = scmp.le.s32.totalorder 1, %s12
      %p217 = scmp.lt.s32.totalorder %s12, 3
      %p218 = pnand %p216, %p217
      %p219 = pneg %p218
      // Predicated region
      $region29: #{tpu_custom_call.1} parent=5 // pred_check
        _
      $region30: #{tpu_custom_call.1} parent=5 // pred_check_branch
        %221 = sbr.rel (%p218) target = $region32
      $region31: #{tpu_custom_call.1} parent=5 // pred_region
        %s222 = ssub.s32 %s12, 1
        %s223 = smul.u32 2, %s23
        %p224 = scmp.lt.s32.totalorder %s22, 1
        %s225 = scalar_select %p224, %s22, 1
        %p226 = scmp.lt.s32.totalorder %s223, 5
        %s227 = scalar_select %p226, %s223, 5
        %p228 = scmp.lt.s32.totalorder %s24, 0
        %s229 = scalar_select %p228, %s24, 0
        %s230 = sadd.s32 %s229, %s227
        %s231 = smul.addr %s225, 6
        %s232 = sadd.s32 %s230, %s231
        %s233 = smul.addr %s232, 8
        %s234 = scalar_lea.vmem %s0, %s233
        %p235 = pneg %p61
        %p236 = pneg %p58
        %s237 = sadd.s32 %s23, 1
        %s238 = smul.u32 2, %s237
        %p239 = scmp.lt.s32.totalorder %s22, 1
        %s240 = scalar_select %p239, %s22, 1
        %p241 = scmp.lt.s32.totalorder %s238, 5
        %s242 = scalar_select %p241, %s238, 5
        %s243 = smul.addr %s240, 6
        %s244 = sadd.s32 %s242, %s243
        %s245 = smul.addr %s244, 8
        %s246 = scalar_lea.vmem %s1, %s245
        %p247 = pneg %p91
        %p248 = pneg %p88
        %s249 = sadd.s32 %s23, 2
        %s250 = smul.u32 2, %s249
        %p251 = scmp.lt.s32.totalorder %s22, 1
        %s252 = scalar_select %p251, %s22, 1
        %p253 = scmp.lt.s32.totalorder %s250, 5
        %s254 = scalar_select %p253, %s250, 5
        %s255 = smul.addr %s252, 6
        %s256 = sadd.s32 %s254, %s255
        %s257 = smul.addr %s256, 8
        %s258 = scalar_lea.vmem %s2, %s257
        %p259 = pneg %p121
        %p260 = pneg %p118
        %p261 = pneg %p151
        %p262 = pneg %p148
        %s263 = sand.u32 %s138, 1
        %s264 = scalar_lea.sflag [#allocation3], %s263
        %s265 = sand.u32 %s138, 1
        %s266 = smul.addr %s265, 16
        %s267 = scalar_lea.vmem [#allocation2], %s266
        %s268 = smul.u32 2, %s23
        %p269 = scmp.lt.s32.totalorder %s22, 1
        %s270 = scalar_select %p269, %s22, 1
        %p271 = scmp.lt.s32.totalorder %s268, 5
        %s272 = scalar_select %p271, %s268, 5
        %p273 = scmp.lt.s32.totalorder %s24, 0
        %s274 = scalar_select %p273, %s24, 0
        %s275 = sadd.s32 %s274, %s272
        %s276 = smul.addr %s270, 6
        %s277 = sadd.s32 %s275, %s276
        %s278 = smul.addr %s277, 8
        %s279 = scalar_lea.vmem %s0, %s278
        %s280 = smul.u32 2, %s23
        %s281 = sadd.s32 %s23, 1
        %s282 = smul.u32 2, %s281
        %p283 = scmp.lt.s32.totalorder %s22, 1
        %s284 = scalar_select %p283, %s22, 1
        %p285 = scmp.lt.s32.totalorder %s282, 5
        %s286 = scalar_select %p285, %s282, 5
        %s287 = smul.addr %s284, 6
        %s288 = sadd.s32 %s286, %s287
        %s289 = smul.addr %s288, 8
        %s290 = scalar_lea.vmem %s1, %s289
        %s291 = sadd.s32 %s23, 1
        %s292 = smul.u32 2, %s291
        %s293 = sadd.s32 %s23, 2
        %s294 = smul.u32 2, %s293
        %p295 = scmp.lt.s32.totalorder %s22, 1
        %s296 = scalar_select %p295, %s22, 1
        %p297 = scmp.lt.s32.totalorder %s294, 5
        %s298 = scalar_select %p297, %s294, 5
        %s299 = smul.addr %s296, 6
        %s300 = sadd.s32 %s298, %s299
        %s301 = smul.addr %s300, 8
        %s302 = scalar_lea.vmem %s2, %s301
        %s303 = sadd.s32 %s23, 2
        %s304 = smul.u32 2, %s303
        %s305 = smul.u32 2, %s23
        %v306 = vld [vmem:[%s279] sm:$0xff]
        %v307 = vld [vmem:[%s279 + $0x8] sm:$0xff]
        %v308 = vmul.f32 %v306, 0.35355338
        %v309 = vmul.f32 %v307, 0.35355338
        %310 = vxpose.xlu0.b32.start [1/16] %v308, 128
        %311 = vxpose.xlu0.b32.cont [2/16] 0.0, 128
        %312 = vxpose.xlu0.b32.cont [3/16] 0.0, 128
        %313 = vxpose.xlu0.b32.cont [4/16] 0.0, 128
        %314 = vxpose.xlu0.b32.cont [5/16] 0.0, 128
        %315 = vxpose.xlu0.b32.cont [6/16] 0.0, 128
        %316 = vxpose.xlu0.b32.cont [7/16] 0.0, 128
        %317 = vxpose.xlu0.b32.cont [8/16] 0.0, 128
        %318 = vxpose.xlu0.b32.cont [9/16] 0.0, 128
        %319 = vxpose.xlu0.b32.cont [10/16] 0.0, 128
        %320 = vxpose.xlu0.b32.cont [11/16] 0.0, 128
        %321 = vxpose.xlu0.b32.cont [12/16] 0.0, 128
        %322 = vxpose.xlu0.b32.cont [13/16] 0.0, 128
        %323 = vxpose.xlu0.b32.cont [14/16] 0.0, 128
        %324 = vxpose.xlu0.b32.cont [15/16] 0.0, 128
        %325 = vxpose.xlu0.b32.end [16/16] 0.0, 128
        %v326 = vpop.trf.xlu0
        %v327 = vpop.trf.xlu0
        %v328 = vpop.trf.xlu0
        %v329 = vpop.trf.xlu0
        %v330 = vpop.trf.xlu0
        %v331 = vpop.trf.xlu0
        %v332 = vpop.trf.xlu0
        %v333 = vpop.trf.xlu0
        %v334 = vpop.trf.xlu0
        %v335 = vpop.trf.xlu0
        %v336 = vpop.trf.xlu0
        %v337 = vpop.trf.xlu0
        %v338 = vpop.trf.xlu0
        %v339 = vpop.trf.xlu0
        %v340 = vpop.trf.xlu0
        %v341 = vpop.trf.xlu0
        %342 = vxpose.xlu0.b32.start [1/16] %v309, 128
        %343 = vxpose.xlu0.b32.cont [2/16] 0.0, 128
        %344 = vxpose.xlu0.b32.cont [3/16] 0.0, 128
        %345 = vxpose.xlu0.b32.cont [4/16] 0.0, 128
        %346 = vxpose.xlu0.b32.cont [5/16] 0.0, 128
        %347 = vxpose.xlu0.b32.cont [6/16] 0.0, 128
        %348 = vxpose.xlu0.b32.cont [7/16] 0.0, 128
        %349 = vxpose.xlu0.b32.cont [8/16] 0.0, 128
        %350 = vxpose.xlu0.b32.cont [9/16] 0.0, 128
        %351 = vxpose.xlu0.b32.cont [10/16] 0.0, 128
        %352 = vxpose.xlu0.b32.cont [11/16] 0.0, 128
        %353 = vxpose.xlu0.b32.cont [12/16] 0.0, 128
        %354 = vxpose.xlu0.b32.cont [13/16] 0.0, 128
        %355 = vxpose.xlu0.b32.cont [14/16] 0.0, 128
        %356 = vxpose.xlu0.b32.cont [15/16] 0.0, 128
        %357 = vxpose.xlu0.b32.end [16/16] 0.0, 128
        %v358 = vpop.trf.xlu0
        %v359 = vpop.trf.xlu0
        %v360 = vpop.trf.xlu0
        %v361 = vpop.trf.xlu0
        %v362 = vpop.trf.xlu0
        %v363 = vpop.trf.xlu0
        %v364 = vpop.trf.xlu0
        %v365 = vpop.trf.xlu0
        %v366 = vpop.trf.xlu0
        %v367 = vpop.trf.xlu0
        %v368 = vpop.trf.xlu0
        %v369 = vpop.trf.xlu0
        %v370 = vpop.trf.xlu0
        %v371 = vpop.trf.xlu0
        %v372 = vpop.trf.xlu0
        %v373 = vpop.trf.xlu0
        %v374 = vld [vmem:[%s290] sm:$0xff]
        %v375 = vld [vmem:[%s290 + $0x8] sm:$0xff]
        %v376 = vld [vmem:[%s302] sm:$0xff]
        %v377 = vld [vmem:[%s302 + $0x8] sm:$0xff]
        %vm378 = vcmask 64512
        %v380 = vsel %vm378, %v326, 0
        %v383 = vsel %vm378, %v327, 0
        %385 = vmatpush.msra.mxu0 0.0
        %386 = vmatpush.msra.mxu0 0.0
        %387 = vmatpush.msra.mxu0 0.0
        %388 = vmatpush.msra.mxu0 0.0
        %389 = vmatpush.msra.mxu0 0.0
        %390 = vmatpush.msra.mxu0 0.0
        %391 = vmatpush.msra.mxu0 0.0
        %392 = vmatpush.msra.mxu0 0.0
        %393 = vmatpush.msra.mxu0 0.0
        %394 = vmatpush.msra.mxu0 0.0
        %395 = vmatpush.msra.mxu0 0.0
        %396 = vmatpush.msra.mxu0 0.0
        %397 = vmatpush.msra.mxu0 0.0
        %398 = vmatpush.msra.mxu0 0.0
        %399 = vmatpush.msra.mxu0 0.0
        %400 = vmatpush.msra.mxu0 %v374
        %401 = vmatmul.f32.gmra.mxu0 %v380
        %v402 = vpop.f32.mrf.mxu0
        %v403 = vadd.f32 0.0, %v402
        %404 = vmatmul.f32.gmra.mxu0 %v383
        %v405 = vpop.f32.mrf.mxu0
        %v406 = vadd.f32 0.0, %v405
        %407 = vdwg.mxu0
        %v409 = vsel %vm378, %v358, 0
        %v412 = vsel %vm378, %v359, 0
        %414 = vmatpush.msra.mxu0 0.0
        %415 = vmatpush.msra.mxu0 0.0
        %416 = vmatpush.msra.mxu0 0.0
        %417 = vmatpush.msra.mxu0 0.0
        %418 = vmatpush.msra.mxu0 0.0
        %419 = vmatpush.msra.mxu0 0.0
        %420 = vmatpush.msra.mxu0 0.0
        %421 = vmatpush.msra.mxu0 0.0
        %422 = vmatpush.msra.mxu0 0.0
        %423 = vmatpush.msra.mxu0 0.0
        %424 = vmatpush.msra.mxu0 0.0
        %425 = vmatpush.msra.mxu0 0.0
        %426 = vmatpush.msra.mxu0 0.0
        %427 = vmatpush.msra.mxu0 0.0
        %428 = vmatpush.msra.mxu0 0.0
        %429 = vmatpush.msra.mxu0 %v375
        %430 = vmatmul.f32.gmra.mxu0 %v409
        %v431 = vpop.f32.mrf.mxu0
        %v432 = vadd.f32 0.0, %v431
        %433 = vmatmul.f32.gmra.mxu0 %v412
        %v434 = vpop.f32.mrf.mxu0
        %v435 = vadd.f32 0.0, %v434
        %436 = vdwg.mxu0
        %vm437 = vcmask 130048
        %v438 = vsel %vm437, %v403, -inf
        %439 = vmax.xlane.f32.xlu0 %v438
        %v440 = vpop.xlane.xlu0 %439
        %v441 = vsel %vm437, %v406, -inf
        %442 = vmax.xlane.f32.xlu0 %v441
        %v443 = vpop.xlane.xlu0 %442
        %v444 = vsel %vm437, %v432, -inf
        %445 = vmax.xlane.f32.xlu0 %v444
        %v446 = vpop.xlane.xlu0 %445
        %v447 = vsel %vm437, %v435, -inf
        %448 = vmax.xlane.f32.xlu0 %v447
        %v449 = vpop.xlane.xlu0 %448
        %v450 = vsub.f32 %v403, %v440
        %v451 = vsub.f32 %v406, %v443
        %v452 = vsub.f32 %v432, %v446
        %v453 = vsub.f32 %v435, %v449
        %v454 = vmul.f32 %v450, 1.442695
        %v455 = vpow.pop %v454
        %v456 = vmul.f32 %v451, 1.442695
        %v457 = vpow.pop %v456
        %v458 = vmul.f32 %v452, 1.442695
        %v459 = vpow.pop %v458
        %v460 = vmul.f32 %v453, 1.442695
        %v461 = vpow.pop %v460
        %v462 = vsel %vm437, %v455, 0.0
        %463 = vadd.xlane.f32.xlu0 %v462
        %v464 = vpop.xlane.xlu0 %463
        %v465 = vsel %vm437, %v457, 0.0
        %466 = vadd.xlane.f32.xlu0 %v465
        %v467 = vpop.xlane.xlu0 %466
        %v468 = vsel %vm437, %v459, 0.0
        %469 = vadd.xlane.f32.xlu0 %v468
        %v470 = vpop.xlane.xlu0 %469
        %v471 = vsel %vm437, %v461, 0.0
        %472 = vadd.xlane.f32.xlu0 %v471
        %v473 = vpop.xlane.xlu0 %472
        %v474 = vrcp.pop %v464
        %v475 = vmul.f32 %v464, %v474
        %v476 = vsub.f32 1.0, %v475
        %v477 = vmul.f32 %v474, %v476
        %v478 = vadd.f32 %v474, %v477
        %vm479 = vweird.f32 %v464
        %vm480 = vweird.f32 %v474
        %vm481 = vmor %vm479, %vm480
        %v482 = vsel %vm481, %v474, %v478
        %v483 = vand.u32 2147483647, %v464
        %vm484 = vcmp.eq.f32.partialorder %v483, 8.507059e+37
        %v485 = vand.u32 %v464, 2147483648
        %v486 = vor.u32 1.1754944e-38, %v485
        %v487 = vsel %vm484, %v486, %v482
        %v488 = vmul.f32 %v455, %v487
        %v489 = vrcp.pop %v467
        %v490 = vmul.f32 %v467, %v489
        %v491 = vsub.f32 1.0, %v490
        %v492 = vmul.f32 %v489, %v491
        %v493 = vadd.f32 %v489, %v492
        %vm494 = vweird.f32 %v467
        %vm495 = vweird.f32 %v489
        %vm496 = vmor %vm494, %vm495
        %v497 = vsel %vm496, %v489, %v493
        %v498 = vand.u32 2147483647, %v467
        %vm499 = vcmp.eq.f32.partialorder %v498, 8.507059e+37
        %v500 = vand.u32 %v467, 2147483648
        %v501 = vor.u32 1.1754944e-38, %v500
        %v502 = vsel %vm499, %v501, %v497
        %v503 = vmul.f32 %v457, %v502
        %v504 = vrcp.pop %v470
        %v505 = vmul.f32 %v470, %v504
        %v506 = vsub.f32 1.0, %v505
        %v507 = vmul.f32 %v504, %v506
        %v508 = vadd.f32 %v504, %v507
        %vm509 = vweird.f32 %v470
        %vm510 = vweird.f32 %v504
        %vm511 = vmor %vm509, %vm510
        %v512 = vsel %vm511, %v504, %v508
        %v513 = vand.u32 2147483647, %v470
        %vm514 = vcmp.eq.f32.partialorder %v513, 8.507059e+37
        %v515 = vand.u32 %v470, 2147483648
        %v516 = vor.u32 1.1754944e-38, %v515
        %v517 = vsel %vm514, %v516, %v512
        %v518 = vmul.f32 %v459, %v517
        %v519 = vrcp.pop %v473
        %v520 = vmul.f32 %v473, %v519
        %v521 = vsub.f32 1.0, %v520
        %v522 = vmul.f32 %v519, %v521
        %v523 = vadd.f32 %v519, %v522
        %vm524 = vweird.f32 %v473
        %vm525 = vweird.f32 %v519
        %vm526 = vmor %vm524, %vm525
        %v527 = vsel %vm526, %v519, %v523
        %v528 = vand.u32 2147483647, %v473
        %vm529 = vcmp.eq.f32.partialorder %v528, 8.507059e+37
        %v530 = vand.u32 %v473, 2147483648
        %v531 = vor.u32 1.1754944e-38, %v530
        %v532 = vsel %vm529, %v531, %v527
        %v533 = vmul.f32 %v461, %v532
        %v535 = vsel %vm437, %v376, 0
        %v538 = vsel %vm437, %v488, 0
        %v541 = vsel %vm437, %v503, 0
        %543 = vmatpush.xpose.msra.mxu0 0.0
        %544 = vmatpush.xpose.msra.mxu0 0.0
        %545 = vmatpush.xpose.msra.mxu0 0.0
        %546 = vmatpush.xpose.msra.mxu0 0.0
        %547 = vmatpush.xpose.msra.mxu0 0.0
        %548 = vmatpush.xpose.msra.mxu0 0.0
        %549 = vmatpush.xpose.msra.mxu0 0.0
        %550 = vmatpush.xpose.msra.mxu0 0.0
        %551 = vmatpush.xpose.msra.mxu0 0.0
        %552 = vmatpush.xpose.msra.mxu0 0.0
        %553 = vmatpush.xpose.msra.mxu0 0.0
        %554 = vmatpush.xpose.msra.mxu0 0.0
        %555 = vmatpush.xpose.msra.mxu0 0.0
        %556 = vmatpush.xpose.msra.mxu0 0.0
        %557 = vmatpush.xpose.msra.mxu0 %v541
        %558 = vmatpush.xpose.msra.mxu0 %v538
        %559 = vmatmul.f32.gmra.mxu0 %v535
        %v560 = vpop.f32.mrf.mxu0
        %v561 = vadd.f32 0.0, %v560
        %562 = vdwg.mxu0
        %v564 = vsel %vm437, %v377, 0
        %v567 = vsel %vm437, %v518, 0
        %v570 = vsel %vm437, %v533, 0
        %572 = vmatpush.xpose.msra.mxu0 0.0
        %573 = vmatpush.xpose.msra.mxu0 0.0
        %574 = vmatpush.xpose.msra.mxu0 0.0
        %575 = vmatpush.xpose.msra.mxu0 0.0
        %576 = vmatpush.xpose.msra.mxu0 0.0
        %577 = vmatpush.xpose.msra.mxu0 0.0
        %578 = vmatpush.xpose.msra.mxu0 0.0
        %579 = vmatpush.xpose.msra.mxu0 0.0
        %580 = vmatpush.xpose.msra.mxu0 0.0
        %581 = vmatpush.xpose.msra.mxu0 0.0
        %582 = vmatpush.xpose.msra.mxu0 0.0
        %583 = vmatpush.xpose.msra.mxu0 0.0
        %584 = vmatpush.xpose.msra.mxu0 0.0
        %585 = vmatpush.xpose.msra.mxu0 0.0
        %586 = vmatpush.xpose.msra.mxu0 %v570
        %587 = vmatpush.xpose.msra.mxu0 %v567
        %588 = vmatmul.f32.gmra.mxu0 %v564
        %v589 = vpop.f32.mrf.mxu0
        %v590 = vadd.f32 0.0, %v589
        %591 = vdwg.mxu0
        %592 = vst.msk [vmem:[%s267] sm:$0xff] %vm437, %v561
        %593 = vst.msk [vmem:[%s267 + $0x8] sm:$0xff] %vm437, %v590
        %s594 = sand.u32 %s138, 1
        %s595 = scalar_lea.sflag [#allocation3], %s594
        %s596 = sand.u32 %s138, 1
        %s597 = smul.addr %s596, 16
        %s598 = scalar_lea.vmem [#allocation2], %s597
        // Predicated region
        $region33: #{tpu_custom_call.1} parent=31 // pred_check
          %p599 = pneg %p148
        $region34: #{tpu_custom_call.1} parent=31 // pred_check_branch
          %601 = sbr.rel (%p599) target = $region36
        $region35: #{tpu_custom_call.1} parent=31 // pred_region
          %s602 = smul.u32 2, %s23
          %604 = vsyncadd %s595, 0
          %s605 = sadd.s32 %s24, %s602
          %s606 = smul.addr %s22, 2
          %s607 = sadd.s32 %s605, %s606
          %s608 = smul.addr %s607, 8
          %s609 = scalar_lea.hbm %s3, %s608
          %s610 = sshll.u32 %s598, 4
          %s611 = int_to_ptr.vmem [resolvable:$true] %s610
          %s612 = sshll.u32 %s609, 4
          %s613 = int_to_ptr.hbm [resolvable:$true] %s612
          %618 = dma.vmem_to_hbm [thread:$0]  %s611, 256, %s613, %s595, 128, 128, 8
        $region36: #{tpu_custom_call.1} parent=31 // pred_fallthru
          _
      $region32: #{tpu_custom_call.1} parent=5 // pred_fallthru
        _
      %p619 = scmp.le.s32.totalorder 2, %s12
      // Predicated region
      $region37: #{tpu_custom_call.1} parent=5 // pred_check
        %p620 = pneg %p619
      $region38: #{tpu_custom_call.1} parent=5 // pred_check_branch
        %622 = sbr.rel (%p620) target = $region40
      $region39: #{tpu_custom_call.1} parent=5 // pred_region
        %s623 = ssub.s32 %s12, 2
        // Predicated region
        $region41: #{tpu_custom_call.1} parent=39 // pred_check
          %p624 = pneg %p154
        $region42: #{tpu_custom_call.1} parent=39 // pred_check_branch
          %626 = sbr.rel (%p624) target = $region44
        $region43: #{tpu_custom_call.1} parent=39 // pred_region
          %s627 = sand.u32 %s139, 1
          %s628 = scalar_lea.sflag [#allocation3], %s627
          %s629 = sand.u32 %s139, 1
          %s630 = smul.addr %s629, 16
          %s631 = scalar_lea.vmem [#allocation2], %s630
          %633 = dma.done %s628, 256
        $region44: #{tpu_custom_call.1} parent=39 // pred_fallthru
          _
      $region40: #{tpu_custom_call.1} parent=5 // pred_fallthru
        _
    $region6: #{tpu_custom_call.1} parent=1 // loop_footer
      %s16 = sadd.s32 1, %s12
    $region7: #{tpu_custom_call.1} parent=1 // loop_footer_branch
      %11 = sbr.rel target = $region3
    $region8: #{tpu_custom_call.1} parent=1 // loop_exit
      _
    %634 = vsyncpa [#allocation3], 1
    %s635 = scalar_lea.sflag [#allocation3], 1
    %636 = vsyncpa %s635, 1

</llo_original>
